<compile_context>
chip_gen: v7x
topology: tpu7x:2x2x1
jax: 0.10.0
libtpu: 0.0.40
codegen_flags: <defaults>
</compile_context>

<pallas_src>
import jax
import jax.numpy as jnp
from jax.experimental import pallas as pl
from jax.experimental.pallas import tpu as pltpu


LN_EPS = 1e-5  # PyTorch nn.LayerNorm default


def _ln_relu(y, gamma, beta):
    """LayerNorm (biased variance, eps=1e-5, affine) followed by ReLU."""
    mean = jnp.mean(y, axis=-1, keepdims=True)
    centered = y - mean                      # reused for the variance pass
    var = jnp.mean(centered * centered, axis=-1, keepdims=True)
    y_hat = centered * jax.lax.rsqrt(var + LN_EPS)
    return jnp.maximum(y_hat * gamma + beta, 0.0)


def _make_fused_critic_kernel(n_hidden, layer_norm):
    """Build a fused forward kernel for `n_hidden` hidden layers."""

    def kernel(*refs):
        # refs = state, action,
        #        w0_state, w0_action, b0, g0, beta0,
        #        (w_i, b_i, g_i, beta_i) for i in 1..n_hidden-1,
        #        wq_row, bq, out
        it = iter(refs)
        state_ref = next(it)
        action_ref = next(it)

        w0s_ref = next(it)
        w0a_ref = next(it)
        b0_ref = next(it)
        g0_ref = next(it)
        beta0_ref = next(it)

        # Layer 0: concat folded in by splitting the matmul over state/action.
        y = (jnp.dot(state_ref[...], w0s_ref[...],
                     preferred_element_type=jnp.float32)
             + jnp.dot(action_ref[...], w0a_ref[...],
                       preferred_element_type=jnp.float32)
             + b0_ref[...])
        if layer_norm:
            x = _ln_relu(y, g0_ref[...], beta0_ref[...])
        else:
            x = jnp.maximum(y, 0.0)

        # Remaining hidden layers (activations never leave vregs/VMEM).
        for _ in range(n_hidden - 1):
            w_ref = next(it)
            b_ref = next(it)
            g_ref = next(it)
            beta_ref = next(it)
            y = jnp.dot(x, w_ref[...],
                        preferred_element_type=jnp.float32) + b_ref[...]
            if layer_norm:
                x = _ln_relu(y, g_ref[...], beta_ref[...])
            else:
                x = jnp.maximum(y, 0.0)

        # Q head: VPU multiply + cross-lane reduce instead of an N=1 MXU matmul.
        wq_ref = next(it)
        bq_ref = next(it)
        o_ref = next(it)
        q = jnp.sum(x * wq_ref[...], axis=-1, keepdims=True) + bq_ref[...]
        o_ref[...] = q

    return kernel


def critic_forward(params, state, action, layer_norm=True):
    """Fused TD3-critic forward: q(state, action), shape (batch, 1)."""
    batch, input_dims = state.shape
    # Round batch up to the f32 sublane count (8); padded rows are discarded.
    batch_pad = max(8, ((batch + 7) // 8) * 8)
    if batch_pad != batch:
        state_p = jnp.pad(state, ((0, batch_pad - batch), (0, 0)))
        action_p = jnp.pad(action, ((0, batch_pad - batch), (0, 0)))
    else:
        state_p, action_p = state, action

    fcs = params["fcs"]
    lns = params["lns"]
    n_hidden = len(fcs)

    w0, b0 = fcs[0]
    g0, beta0 = lns[0]
    args = [
        state_p.astype(jnp.float32),
        action_p.astype(jnp.float32),
        w0[:input_dims, :],          # state slice of the first weight
        w0[input_dims:, :],          # action slice of the first weight
        b0.reshape(1, -1),
        g0.reshape(1, -1),
        beta0.reshape(1, -1),
    ]
    for i in range(1, n_hidden):
        w, b = fcs[i]
        g, be = lns[i]
        args += [w, b.reshape(1, -1), g.reshape(1, -1), be.reshape(1, -1)]
    wq, bq = params["q"]
    args += [wq.reshape(1, -1), bq.reshape(1, 1)]   # q head as a row vector

    kernel = _make_fused_critic_kernel(n_hidden, layer_norm)
    q_pad = pl.pallas_call(
        kernel,
        out_shape=jax.ShapeDtypeStruct((batch_pad, 1), jnp.float32),
        in_specs=[pl.BlockSpec(memory_space=pltpu.MemorySpace.VMEM)] * len(args),
        out_specs=pl.BlockSpec(memory_space=pltpu.MemorySpace.VMEM),
    )(*args)
    return q_pad[:batch]


def init_critic_params(key, input_dims, n_actions, fc_dims):
    """Deterministic fan-in uniform init (matches the usual TD3 initWB scheme)."""
    params = {"fcs": [], "lns": []}
    in_dim = input_dims + n_actions
    for out_dim in fc_dims:
        key, kw, kb = jax.random.split(key, 3)
        bound = 1.0 / jnp.sqrt(jnp.float32(in_dim))
        w = jax.random.uniform(kw, (in_dim, out_dim), jnp.float32, -bound, bound)
        b = jax.random.uniform(kb, (out_dim,), jnp.float32, -bound, bound)
        params["fcs"].append((w, b))
        # nn.LayerNorm: gamma=1, beta=0
        params["lns"].append((jnp.ones((out_dim,), jnp.float32),
                              jnp.zeros((out_dim,), jnp.float32)))
        in_dim = out_dim
    key, kw, kb = jax.random.split(key, 3)
    bound = 1.0 / jnp.sqrt(jnp.float32(in_dim))
    wq = jax.random.uniform(kw, (in_dim, 1), jnp.float32, -bound, bound)
    bq = jax.random.uniform(kb, (1,), jnp.float32, -bound, bound)
    params["q"] = (wq, bq)
    return params


def _ref_forward(params, state, action, layer_norm=True):
    """Pure-JAX reference of the same math (for correctness checking)."""
    x = jnp.concatenate([state, action], axis=1)
    for (w, b), (g, be) in zip(params["fcs"], params["lns"]):
        y = x @ w + b
        if layer_norm:
            m = jnp.mean(y, axis=-1, keepdims=True)
            v = jnp.mean((y - m) ** 2, axis=-1, keepdims=True)
            y = (y - m) / jnp.sqrt(v + LN_EPS) * g + be
        x = jnp.maximum(y, 0.0)
    wq, bq = params["q"]
    return x @ wq + bq


if __name__ == "__main__":
    # Small, forward-consistent shapes: batch=2, state dims=16, actions=4,
    # hidden fc_dims=[32, 32].
    batch = 2
    input_dims = 16
    n_actions = 4
    fc_dims = [32, 32]

    key = jax.random.PRNGKey(0)
    key, ks, ka, kp = jax.random.split(key, 4)
    state = jax.random.normal(ks, (batch, input_dims), jnp.float32)
    action = jax.random.normal(ka, (batch, n_actions), jnp.float32)

    params = init_critic_params(kp, input_dims, n_actions, fc_dims)

    # layer_norm=True path (default of the PyTorch module)
    q = critic_forward(params, state, action, layer_norm=True)
    q = jax.block_until_ready(q)
    ref = _ref_forward(params, state, action, layer_norm=True)
    assert q.shape == (batch, 1)
    assert jnp.allclose(q, ref, atol=1e-5, rtol=1e-5)

    # layer_norm=False path (ReLU still fused inside the kernel)
    q_nl = critic_forward(params, state, action, layer_norm=False)
    q_nl = jax.block_until_ready(q_nl)
    ref_nl = _ref_forward(params, state, action, layer_norm=False)
    assert q_nl.shape == (batch, 1)
    assert jnp.allclose(q_nl, ref_nl, atol=1e-5, rtol=1e-5)

    print("KERNEL_OK")
</pallas_src>

<mosaic_0001>
module attributes {stable_mosaic.version = 11 : i64} {
  func.func @kernel(%arg0: memref<8x16xf32, #tpu.memory_space<vmem>>, %arg1: memref<8x4xf32, #tpu.memory_space<vmem>>, %arg2: memref<16x32xf32, #tpu.memory_space<vmem>>, %arg3: memref<4x32xf32, #tpu.memory_space<vmem>>, %arg4: memref<1x32xf32, #tpu.memory_space<vmem>>, %arg5: memref<1x32xf32, #tpu.memory_space<vmem>>, %arg6: memref<1x32xf32, #tpu.memory_space<vmem>>, %arg7: memref<32x32xf32, #tpu.memory_space<vmem>>, %arg8: memref<1x32xf32, #tpu.memory_space<vmem>>, %arg9: memref<1x32xf32, #tpu.memory_space<vmem>>, %arg10: memref<1x32xf32, #tpu.memory_space<vmem>>, %arg11: memref<1x32xf32, #tpu.memory_space<vmem>>, %arg12: memref<1x1xf32, #tpu.memory_space<vmem>>, %arg13: memref<8x1xf32, #tpu.memory_space<vmem>>) attributes {dimension_semantics = [], scalar_prefetch = 0 : i64, scratch_operands = 0 : i64, tpu.core_type = #tpu.core_type<tc>} {
    %c0 = arith.constant 0 : index
    %c0_0 = arith.constant 0 : index
    %0 = vector.load %arg0[%c0, %c0_0] : memref<8x16xf32, #tpu.memory_space<vmem>>, vector<8x16xf32>
    %c0_1 = arith.constant 0 : index
    %c0_2 = arith.constant 0 : index
    %1 = vector.load %arg2[%c0_1, %c0_2] : memref<16x32xf32, #tpu.memory_space<vmem>>, vector<16x32xf32>
    %cst = arith.constant dense<0.000000e+00> : vector<8x32xf32>
    %2 = tpu.matmul %0, %1, %cst {dimension_numbers = #tpu.dot_dimension_numbers<[1], [0], [0], [1], [0, 0, 1, 1], [], []>} : vector<8x16xf32>, vector<16x32xf32>, vector<8x32xf32> -> vector<8x32xf32>
    %c0_3 = arith.constant 0 : index
    %c0_4 = arith.constant 0 : index
    %3 = vector.load %arg1[%c0_3, %c0_4] : memref<8x4xf32, #tpu.memory_space<vmem>>, vector<8x4xf32>
    %c0_5 = arith.constant 0 : index
    %c0_6 = arith.constant 0 : index
    %4 = vector.load %arg3[%c0_5, %c0_6] : memref<4x32xf32, #tpu.memory_space<vmem>>, vector<4x32xf32>
    %cst_7 = arith.constant dense<0.000000e+00> : vector<8x32xf32>
    %5 = tpu.matmul %3, %4, %cst_7 {dimension_numbers = #tpu.dot_dimension_numbers<[1], [0], [0], [1], [0, 0, 1, 1], [], []>} : vector<8x4xf32>, vector<4x32xf32>, vector<8x32xf32> -> vector<8x32xf32>
    %6 = arith.addf %2, %5 : vector<8x32xf32>
    %c0_8 = arith.constant 0 : index
    %c0_9 = arith.constant 0 : index
    %7 = vector.load %arg4[%c0_8, %c0_9] : memref<1x32xf32, #tpu.memory_space<vmem>>, vector<1x32xf32>
    %8 = vector.broadcast %7 : vector<1x32xf32> to vector<8x32xf32>
    %9 = arith.addf %6, %8 : vector<8x32xf32>
    %c0_10 = arith.constant 0 : index
    %c0_11 = arith.constant 0 : index
    %10 = vector.load %arg5[%c0_10, %c0_11] : memref<1x32xf32, #tpu.memory_space<vmem>>, vector<1x32xf32>
    %c0_12 = arith.constant 0 : index
    %c0_13 = arith.constant 0 : index
    %11 = vector.load %arg6[%c0_12, %c0_13] : memref<1x32xf32, #tpu.memory_space<vmem>>, vector<1x32xf32>
    %cst_14 = arith.constant dense<0.000000e+00> : vector<8xf32>
    %12 = vector.multi_reduction <add>, %9, %cst_14 [1] : vector<8x32xf32> to vector<8xf32>
    %13 = vector.shape_cast %12 : vector<8xf32> to vector<8x1xf32>
    %cst_15 = arith.constant 3.200000e+01 : f32
    %14 = vector.broadcast %cst_15 : f32 to vector<8x1xf32>
    %15 = arith.divf %13, %14 : vector<8x1xf32>
    %16 = vector.broadcast %15 : vector<8x1xf32> to vector<8x32xf32>
    %17 = arith.subf %9, %16 : vector<8x32xf32>
    %18 = arith.mulf %17, %17 : vector<8x32xf32>
    %cst_16 = arith.constant dense<0.000000e+00> : vector<8xf32>
    %19 = vector.multi_reduction <add>, %18, %cst_16 [1] : vector<8x32xf32> to vector<8xf32>
    %20 = vector.shape_cast %19 : vector<8xf32> to vector<8x1xf32>
    %cst_17 = arith.constant 3.200000e+01 : f32
    %21 = vector.broadcast %cst_17 : f32 to vector<8x1xf32>
    %22 = arith.divf %20, %21 : vector<8x1xf32>
    %cst_18 = arith.constant 9.99999974E-6 : f32
    %23 = vector.broadcast %cst_18 : f32 to vector<8x1xf32>
    %24 = arith.addf %22, %23 : vector<8x1xf32>
    %25 = math.rsqrt %24 : vector<8x1xf32>
    %26 = vector.broadcast %25 : vector<8x1xf32> to vector<8x32xf32>
    %27 = arith.mulf %17, %26 : vector<8x32xf32>
    %28 = vector.broadcast %10 : vector<1x32xf32> to vector<8x32xf32>
    %29 = arith.mulf %27, %28 : vector<8x32xf32>
    %30 = vector.broadcast %11 : vector<1x32xf32> to vector<8x32xf32>
    %31 = arith.addf %29, %30 : vector<8x32xf32>
    %cst_19 = arith.constant 0.000000e+00 : f32
    %32 = vector.broadcast %cst_19 : f32 to vector<8x32xf32>
    %33 = arith.maximumf %31, %32 : vector<8x32xf32>
    %c0_20 = arith.constant 0 : index
    %c0_21 = arith.constant 0 : index
    %34 = vector.load %arg7[%c0_20, %c0_21] : memref<32x32xf32, #tpu.memory_space<vmem>>, vector<32x32xf32>
    %cst_22 = arith.constant dense<0.000000e+00> : vector<8x32xf32>
    %35 = tpu.matmul %33, %34, %cst_22 {dimension_numbers = #tpu.dot_dimension_numbers<[1], [0], [0], [1], [0, 0, 1, 1], [], []>} : vector<8x32xf32>, vector<32x32xf32>, vector<8x32xf32> -> vector<8x32xf32>
    %c0_23 = arith.constant 0 : index
    %c0_24 = arith.constant 0 : index
    %36 = vector.load %arg8[%c0_23, %c0_24] : memref<1x32xf32, #tpu.memory_space<vmem>>, vector<1x32xf32>
    %37 = vector.broadcast %36 : vector<1x32xf32> to vector<8x32xf32>
    %38 = arith.addf %35, %37 : vector<8x32xf32>
    %c0_25 = arith.constant 0 : index
    %c0_26 = arith.constant 0 : index
    %39 = vector.load %arg9[%c0_25, %c0_26] : memref<1x32xf32, #tpu.memory_space<vmem>>, vector<1x32xf32>
    %c0_27 = arith.constant 0 : index
    %c0_28 = arith.constant 0 : index
    %40 = vector.load %arg10[%c0_27, %c0_28] : memref<1x32xf32, #tpu.memory_space<vmem>>, vector<1x32xf32>
    %cst_29 = arith.constant dense<0.000000e+00> : vector<8xf32>
    %41 = vector.multi_reduction <add>, %38, %cst_29 [1] : vector<8x32xf32> to vector<8xf32>
    %42 = vector.shape_cast %41 : vector<8xf32> to vector<8x1xf32>
    %cst_30 = arith.constant 3.200000e+01 : f32
    %43 = vector.broadcast %cst_30 : f32 to vector<8x1xf32>
    %44 = arith.divf %42, %43 : vector<8x1xf32>
    %45 = vector.broadcast %44 : vector<8x1xf32> to vector<8x32xf32>
    %46 = arith.subf %38, %45 : vector<8x32xf32>
    %47 = arith.mulf %46, %46 : vector<8x32xf32>
    %cst_31 = arith.constant dense<0.000000e+00> : vector<8xf32>
    %48 = vector.multi_reduction <add>, %47, %cst_31 [1] : vector<8x32xf32> to vector<8xf32>
    %49 = vector.shape_cast %48 : vector<8xf32> to vector<8x1xf32>
    %cst_32 = arith.constant 3.200000e+01 : f32
    %50 = vector.broadcast %cst_32 : f32 to vector<8x1xf32>
    %51 = arith.divf %49, %50 : vector<8x1xf32>
    %cst_33 = arith.constant 9.99999974E-6 : f32
    %52 = vector.broadcast %cst_33 : f32 to vector<8x1xf32>
    %53 = arith.addf %51, %52 : vector<8x1xf32>
    %54 = math.rsqrt %53 : vector<8x1xf32>
    %55 = vector.broadcast %54 : vector<8x1xf32> to vector<8x32xf32>
    %56 = arith.mulf %46, %55 : vector<8x32xf32>
    %57 = vector.broadcast %39 : vector<1x32xf32> to vector<8x32xf32>
    %58 = arith.mulf %56, %57 : vector<8x32xf32>
    %59 = vector.broadcast %40 : vector<1x32xf32> to vector<8x32xf32>
    %60 = arith.addf %58, %59 : vector<8x32xf32>
    %cst_34 = arith.constant 0.000000e+00 : f32
    %61 = vector.broadcast %cst_34 : f32 to vector<8x32xf32>
    %62 = arith.maximumf %60, %61 : vector<8x32xf32>
    %c0_35 = arith.constant 0 : index
    %c0_36 = arith.constant 0 : index
    %63 = vector.load %arg11[%c0_35, %c0_36] : memref<1x32xf32, #tpu.memory_space<vmem>>, vector<1x32xf32>
    %64 = vector.broadcast %63 : vector<1x32xf32> to vector<8x32xf32>
    %65 = arith.mulf %62, %64 : vector<8x32xf32>
    %cst_37 = arith.constant dense<0.000000e+00> : vector<8xf32>
    %66 = vector.multi_reduction <add>, %65, %cst_37 [1] : vector<8x32xf32> to vector<8xf32>
    %67 = vector.shape_cast %66 : vector<8xf32> to vector<8x1xf32>
    %c0_38 = arith.constant 0 : index
    %c0_39 = arith.constant 0 : index
    %68 = vector.load %arg12[%c0_38, %c0_39] : memref<1x1xf32, #tpu.memory_space<vmem>>, vector<1x1xf32>
    %69 = vector.broadcast %68 : vector<1x1xf32> to vector<8x1xf32>
    %70 = arith.addf %67, %69 : vector<8x1xf32>
    %c0_40 = arith.constant 0 : index
    %c0_41 = arith.constant 0 : index
    %71 = vector.load %arg13[%c0_40, %c0_41] : memref<8x1xf32, #tpu.memory_space<vmem>>, vector<8x1xf32>
    tpu.vector_store %arg13[%c0_40, %c0_41], %70 {strides = array<i32>} : memref<8x1xf32, #tpu.memory_space<vmem>>, vector<8x1xf32>,
    return
  }
}

</mosaic_0001>

<llo_original>
// kernel: tpu_custom_call.1
$region0: #{tpu_custom_call.1}
  #allocation0 [shape = 'u32[]', space=smem, size = 0x4, offset = 0x4, fixed_abs, tag = 'smem constant byte address 0x4 - core index']
  #allocation1 [shape = 'u32[144,128]{1,0:T(1,128)}', space=vmem, size = 0x12000, scoped, tag = 'internal scratch']
  #allocation2 [shape = 'f32[1,1]{1,0:T(1,128)S(1)}', space=vmem, size = 0x200, scoped, tag = 'scoped memory for tpu_custom_call.1']
  %s0 = inlined_call_operand.vmem [shape: f32[8,16], index: 0, kind: input, shape index: {}]
  %s1 = inlined_call_operand.vmem [shape: f32[8,4], index: 1, kind: input, shape index: {}]
  %s2 = inlined_call_operand.hbm [shape: f32[16,32], index: 2, kind: input, shape index: {}]
  %s3 = inlined_call_operand.hbm [shape: f32[4,32], index: 3, kind: input, shape index: {}]
  %s4 = inlined_call_operand.vmem [shape: f32[1,32], index: 4, kind: input, shape index: {}]
  %s5 = inlined_call_operand.vmem [shape: f32[1,32], index: 5, kind: input, shape index: {}]
  %s6 = inlined_call_operand.hbm [shape: f32[1,32], index: 6, kind: input, shape index: {}]
  %s7 = inlined_call_operand.vmem [shape: f32[32,32], index: 7, kind: input, shape index: {}]
  %s8 = inlined_call_operand.vmem [shape: f32[1,32], index: 8, kind: input, shape index: {}]
  %s9 = inlined_call_operand.vmem [shape: f32[1,32], index: 9, kind: input, shape index: {}]
  %s10 = inlined_call_operand.vmem [shape: f32[1,32], index: 10, kind: input, shape index: {}]
  %s11 = inlined_call_operand.vmem [shape: f32[1,32], index: 11, kind: input, shape index: {}]
  %s12 = inlined_call_operand.<no memory space> [shape: f32[1,1], index: 12, kind: input, shape index: {}]
  %s13 = inlined_call_operand.vmem [shape: f32[8,1], index: 13, kind: output, shape index: {}]
  %s14 = sld [smem:[#allocation0]]
  $region74: #{tpu_custom_call.1} parent=0
    _
  %s16 = ssub.s32 1, %s14
  %s17 = scalar_select 0, %s16, %s14
  %v18 = vstv %s12
  %19 = vst [vmem:[#allocation2] sm:$0x1] %v18
  $region1: #{tpu_custom_call.1} parent=0
    #allocation3 [shape = 'u8[8192]{0}', space=vmem, size = 0x2000, scoped, tag = 'input window, operand 2, single buffered']
    #allocation4 [shape = 's32[1]{0}', space=sflag, size = 0x4, scoped, tag = 'scoped memory for tpu_custom_call.1']
    #allocation5 [shape = 'u8[2048]{0}', space=vmem, size = 0x800, scoped, tag = 'input window, operand 3, single buffered']
    #allocation6 [shape = 's32[1]{0}', space=sflag, size = 0x4, scoped, tag = 'scoped memory for tpu_custom_call.1']
    #allocation7 [shape = 'u8[512]{0}', space=vmem, size = 0x400, scoped, tag = 'input window, operand 6, single buffered']
    %20 = vsyncpa [#allocation4], 0
    %21 = vsyncpa [#allocation6], 0
    // Predicated region
    $region2: #{tpu_custom_call.1} parent=1 // pred_check
      _
    $region3: #{tpu_custom_call.1} parent=1 // pred_check_branch
      %23 = sbr.rel (0) target = $region5
    $region4: #{tpu_custom_call.1} parent=1 // pred_region
      _
    $region5: #{tpu_custom_call.1} parent=1 // pred_fallthru
      _
    // Predicated region
    $region6: #{tpu_custom_call.1} parent=1 // pred_check
      _
    $region7: #{tpu_custom_call.1} parent=1 // pred_check_branch
      %25 = sbr.rel (0) target = $region9
    $region8: #{tpu_custom_call.1} parent=1 // pred_region
      _
    $region9: #{tpu_custom_call.1} parent=1 // pred_fallthru
      _
    // Predicated region
    $region10: #{tpu_custom_call.1} parent=1 // pred_check
      _
    $region11: #{tpu_custom_call.1} parent=1 // pred_check_branch
      %27 = sbr.rel (0) target = $region13
    $region12: #{tpu_custom_call.1} parent=1 // pred_region
      %s29 = ssub.s32 256, 256
      %30 = vsyncadd [#allocation4], %s29
      %s31 = sshll.u32 [#allocation3], 4
      %s32 = int_to_ptr.vmem [resolvable:$true] %s31
      %37 = dma.hbm_to_vmem [thread:$0]  %s2, 256, %s32, [#allocation4], 128, 128, 8
    $region13: #{tpu_custom_call.1} parent=1 // pred_fallthru
      _
    // Predicated region
    $region14: #{tpu_custom_call.1} parent=1 // pred_check
      _
    $region15: #{tpu_custom_call.1} parent=1 // pred_check_branch
      %39 = sbr.rel (0) target = $region17
    $region16: #{tpu_custom_call.1} parent=1 // pred_region
      %s41 = ssub.s32 64, 64
      %42 = vsyncadd [#allocation6], %s41
      %s44 = sshll.u32 [#allocation5], 4
      %s45 = int_to_ptr.vmem [resolvable:$true] %s44
      %47 = dma.hbm_to_vmem [thread:$0]  %s3, 64, %s45, [#allocation6]
    $region17: #{tpu_custom_call.1} parent=1 // pred_fallthru
      _
    // Predicated region
    $region18: #{tpu_custom_call.1} parent=1 // pred_check
      _
    $region19: #{tpu_custom_call.1} parent=1 // pred_check_branch
      %49 = sbr.rel (0) target = $region21
    $region20: #{tpu_custom_call.1} parent=1 // pred_region
      _
    $region21: #{tpu_custom_call.1} parent=1 // pred_fallthru
      _
    // Predicated region
    $region22: #{tpu_custom_call.1} parent=1 // pred_check
      _
    $region23: #{tpu_custom_call.1} parent=1 // pred_check_branch
      %51 = sbr.rel (0) target = $region25
    $region24: #{tpu_custom_call.1} parent=1 // pred_region
      _
    $region25: #{tpu_custom_call.1} parent=1 // pred_fallthru
      _
    // Predicated region
    $region26: #{tpu_custom_call.1} parent=1 // pred_check
      _
    $region27: #{tpu_custom_call.1} parent=1 // pred_check_branch
      %53 = sbr.rel (0) target = $region29
    $region28: #{tpu_custom_call.1} parent=1 // pred_region
      %s55 = ssub.s32 16, 16
      %56 = vsyncadd [#allocation6], %s55
      %s58 = sshll.u32 [#allocation7], 4
      %s59 = int_to_ptr.vmem [resolvable:$true] %s58
      %61 = dma.hbm_to_vmem [thread:$0]  %s6, 16, %s59, [#allocation6]
    $region29: #{tpu_custom_call.1} parent=1 // pred_fallthru
      _
    // Predicated region
    $region30: #{tpu_custom_call.1} parent=1 // pred_check
      _
    $region31: #{tpu_custom_call.1} parent=1 // pred_check_branch
      %63 = sbr.rel (0) target = $region33
    $region32: #{tpu_custom_call.1} parent=1 // pred_region
      _
    $region33: #{tpu_custom_call.1} parent=1 // pred_fallthru
      _
    // Predicated region
    $region34: #{tpu_custom_call.1} parent=1 // pred_check
      _
    $region35: #{tpu_custom_call.1} parent=1 // pred_check_branch
      %65 = sbr.rel (0) target = $region37
    $region36: #{tpu_custom_call.1} parent=1 // pred_region
      _
    $region37: #{tpu_custom_call.1} parent=1 // pred_fallthru
      _
    // Predicated region
    $region38: #{tpu_custom_call.1} parent=1 // pred_check
      _
    $region39: #{tpu_custom_call.1} parent=1 // pred_check_branch
      %67 = sbr.rel (0) target = $region41
    $region40: #{tpu_custom_call.1} parent=1 // pred_region
      _
    $region41: #{tpu_custom_call.1} parent=1 // pred_fallthru
      _
    // Predicated region
    $region42: #{tpu_custom_call.1} parent=1 // pred_check
      _
    $region43: #{tpu_custom_call.1} parent=1 // pred_check_branch
      %69 = sbr.rel (0) target = $region45
    $region44: #{tpu_custom_call.1} parent=1 // pred_region
      _
    $region45: #{tpu_custom_call.1} parent=1 // pred_fallthru
      _
    // Predicated region
    $region46: #{tpu_custom_call.1} parent=1 // pred_check
      _
    $region47: #{tpu_custom_call.1} parent=1 // pred_check_branch
      %71 = sbr.rel (0) target = $region49
    $region48: #{tpu_custom_call.1} parent=1 // pred_region
      _
    $region49: #{tpu_custom_call.1} parent=1 // pred_fallthru
      _
    // Predicated region
    $region50: #{tpu_custom_call.1} parent=1 // pred_check
      _
    $region51: #{tpu_custom_call.1} parent=1 // pred_check_branch
      %73 = sbr.rel (0) target = $region53
    $region52: #{tpu_custom_call.1} parent=1 // pred_region
      _
    $region53: #{tpu_custom_call.1} parent=1 // pred_fallthru
      _
    // Predicated region
    $region54: #{tpu_custom_call.1} parent=1 // pred_check
      _
    $region55: #{tpu_custom_call.1} parent=1 // pred_check_branch
      %75 = sbr.rel (0) target = $region57
    $region56: #{tpu_custom_call.1} parent=1 // pred_region
      %76 = dma.done [#allocation4], 256
    $region57: #{tpu_custom_call.1} parent=1 // pred_fallthru
      _
    // Predicated region
    $region58: #{tpu_custom_call.1} parent=1 // pred_check
      _
    $region59: #{tpu_custom_call.1} parent=1 // pred_check_branch
      %78 = sbr.rel (0) target = $region61
    $region60: #{tpu_custom_call.1} parent=1 // pred_region
      %79 = dma.done [#allocation6], 64
    $region61: #{tpu_custom_call.1} parent=1 // pred_fallthru
      _
    // Predicated region
    $region62: #{tpu_custom_call.1} parent=1 // pred_check
      _
    $region63: #{tpu_custom_call.1} parent=1 // pred_check_branch
      %81 = sbr.rel (0) target = $region65
    $region64: #{tpu_custom_call.1} parent=1 // pred_region
      %82 = dma.done [#allocation6], 16
    $region65: #{tpu_custom_call.1} parent=1 // pred_fallthru
      _
    %v83 = vld [vmem:[%s0] sm:$0xff]
    %v84 = vld [vmem:[#allocation3] sm:$0xff]
    %v85 = vld [vmem:[#allocation3 + $0x8] sm:$0xff]
    %v86 = vld [vmem:[%s1] sm:$0xff]
    %v87 = vld [vmem:[#allocation5] sm:$0xf]
    %vm88 = vcmask 31744
    %v90 = vsel %vm88, %v86, 0
    %vm92 = vcmask 1043456
    %v94 = vsel %vm92, %v87, 0
    %96 = vmatprep.subr.mxu0 0.0
    %97 = vmatpush1.msra.mxu0 %v94
    %98 = vmatprep.subr.mxu0 0.0
    %99 = vmatpush1.msra.mxu0 0.0
    %100 = vmatprep.subr.mxu0 0.0
    %101 = vmatpush1.msra.mxu0 0.0
    %102 = vmatprep.subr.mxu0 0.0
    %103 = vmatpush1.msra.mxu0 0.0
    %104 = vmatprep.subr.mxu0 0.0
    %105 = vmatpush1.msra.mxu0 0.0
    %106 = vmatprep.subr.mxu0 0.0
    %107 = vmatpush1.msra.mxu0 0.0
    %108 = vmatprep.subr.mxu0 0.0
    %109 = vmatpush1.msra.mxu0 0.0
    %110 = vmatprep.subr.mxu0 0.0
    %111 = vmatpush1.msra.mxu0 0.0
    %112 = vmatprep.subr.mxu0 0.0
    %113 = vmatpush1.msra.mxu0 0.0
    %114 = vmatprep.subr.mxu0 0.0
    %115 = vmatpush1.msra.mxu0 0.0
    %116 = vmatprep.subr.mxu0 0.0
    %117 = vmatpush1.msra.mxu0 0.0
    %118 = vmatprep.subr.mxu0 0.0
    %119 = vmatpush1.msra.mxu0 0.0
    %120 = vmatprep.subr.mxu0 0.0
    %121 = vmatpush1.msra.mxu0 0.0
    %122 = vmatprep.subr.mxu0 0.0
    %123 = vmatpush1.msra.mxu0 0.0
    %124 = vmatprep.subr.mxu0 0.0
    %125 = vmatpush1.msra.mxu0 0.0
    %126 = vmatprep.subr.mxu0 0.0
    %127 = vmatpush1.msra.mxu0 0.0
    %128 = vmatprep.subr.mxu0 0.0
    %129 = vmatpush1.msra.mxu0 0.0
    %130 = vmatprep.subr.mxu0 0.0
    %131 = vmatpush1.msra.mxu0 0.0
    %132 = vmatprep.subr.mxu0 0.0
    %133 = vmatpush1.msra.mxu0 0.0
    %134 = vmatprep.subr.mxu0 0.0
    %135 = vmatpush1.msra.mxu0 0.0
    %136 = vmatprep.subr.mxu0 0.0
    %137 = vmatpush1.msra.mxu0 0.0
    %138 = vmatprep.subr.mxu0 0.0
    %139 = vmatpush1.msra.mxu0 0.0
    %140 = vmatprep.subr.mxu0 0.0
    %141 = vmatpush1.msra.mxu0 0.0
    %142 = vmatprep.subr.mxu0 0.0
    %143 = vmatpush1.msra.mxu0 0.0
    %144 = vmatprep.subr.mxu0 0.0
    %145 = vmatpush1.msra.mxu0 0.0
    %146 = vmatprep.subr.mxu0 0.0
    %147 = vmatpush1.msra.mxu0 0.0
    %148 = vmatprep.subr.mxu0 0.0
    %149 = vmatpush1.msra.mxu0 0.0
    %150 = vmatprep.subr.mxu0 0.0
    %151 = vmatpush1.msra.mxu0 0.0
    %152 = vmatprep.subr.mxu0 0.0
    %153 = vmatpush1.msra.mxu0 0.0
    %154 = vmatprep.subr.mxu0 0.0
    %155 = vmatpush1.msra.mxu0 0.0
    %156 = vmatprep.subr.mxu0 0.0
    %157 = vmatpush1.msra.mxu0 0.0
    %158 = vmatprep.subr.mxu0 0.0
    %159 = vmatpush1.msra.mxu0 0.0
    %160 = vmatprep.mubr.f32.mxu0 0.0
    %161 = vmatmul.mubr.f32.gmra.mrb[0].mxu0 %v90
    %v162 = vpop.f32.mrb[0].mxu0
    %v163 = vadd.f32 0.0, %v162
    %v164 = vpop.f32.mrb[0].mxu0
    %165 = vdwg.mxu0
    %vm166 = vcmask 130048
    %v168 = vsel %vm166, %v83, 0
    %170 = vmatprep.subr.mxu0 0.0
    %171 = vmatpush1.msra.mxu0 %v84
    %172 = vmatprep.subr.mxu0 0.0
    %173 = vmatpush1.msra.mxu0 %v85
    %174 = vmatprep.subr.mxu0 0.0
    %175 = vmatpush1.msra.mxu0 0.0
    %176 = vmatprep.subr.mxu0 0.0
    %177 = vmatpush1.msra.mxu0 0.0
    %178 = vmatprep.subr.mxu0 0.0
    %179 = vmatpush1.msra.mxu0 0.0
    %180 = vmatprep.subr.mxu0 0.0
    %181 = vmatpush1.msra.mxu0 0.0
    %182 = vmatprep.subr.mxu0 0.0
    %183 = vmatpush1.msra.mxu0 0.0
    %184 = vmatprep.subr.mxu0 0.0
    %185 = vmatpush1.msra.mxu0 0.0
    %186 = vmatprep.subr.mxu0 0.0
    %187 = vmatpush1.msra.mxu0 0.0
    %188 = vmatprep.subr.mxu0 0.0
    %189 = vmatpush1.msra.mxu0 0.0
    %190 = vmatprep.subr.mxu0 0.0
    %191 = vmatpush1.msra.mxu0 0.0
    %192 = vmatprep.subr.mxu0 0.0
    %193 = vmatpush1.msra.mxu0 0.0
    %194 = vmatprep.subr.mxu0 0.0
    %195 = vmatpush1.msra.mxu0 0.0
    %196 = vmatprep.subr.mxu0 0.0
    %197 = vmatpush1.msra.mxu0 0.0
    %198 = vmatprep.subr.mxu0 0.0
    %199 = vmatpush1.msra.mxu0 0.0
    %200 = vmatprep.subr.mxu0 0.0
    %201 = vmatpush1.msra.mxu0 0.0
    %202 = vmatprep.subr.mxu0 0.0
    %203 = vmatpush1.msra.mxu0 0.0
    %204 = vmatprep.subr.mxu0 0.0
    %205 = vmatpush1.msra.mxu0 0.0
    %206 = vmatprep.subr.mxu0 0.0
    %207 = vmatpush1.msra.mxu0 0.0
    %208 = vmatprep.subr.mxu0 0.0
    %209 = vmatpush1.msra.mxu0 0.0
    %210 = vmatprep.subr.mxu0 0.0
    %211 = vmatpush1.msra.mxu0 0.0
    %212 = vmatprep.subr.mxu0 0.0
    %213 = vmatpush1.msra.mxu0 0.0
    %214 = vmatprep.subr.mxu0 0.0
    %215 = vmatpush1.msra.mxu0 0.0
    %216 = vmatprep.subr.mxu0 0.0
    %217 = vmatpush1.msra.mxu0 0.0
    %218 = vmatprep.subr.mxu0 0.0
    %219 = vmatpush1.msra.mxu0 0.0
    %220 = vmatprep.subr.mxu0 0.0
    %221 = vmatpush1.msra.mxu0 0.0
    %222 = vmatprep.subr.mxu0 0.0
    %223 = vmatpush1.msra.mxu0 0.0
    %224 = vmatprep.subr.mxu0 0.0
    %225 = vmatpush1.msra.mxu0 0.0
    %226 = vmatprep.subr.mxu0 0.0
    %227 = vmatpush1.msra.mxu0 0.0
    %228 = vmatprep.subr.mxu0 0.0
    %229 = vmatpush1.msra.mxu0 0.0
    %230 = vmatprep.subr.mxu0 0.0
    %231 = vmatpush1.msra.mxu0 0.0
    %232 = vmatprep.subr.mxu0 0.0
    %233 = vmatpush1.msra.mxu0 0.0
    %234 = vmatprep.mubr.f32.mxu0 0.0
    %235 = vmatmul.mubr.f32.gmra.mrb[0].mxu0 %v168
    %v236 = vpop.f32.mrb[0].mxu0
    %v237 = vadd.f32 %v163, %v236
    %v238 = vpop.f32.mrb[0].mxu0
    %239 = vdwg.mxu0
    %v240 = vld [vmem:[%s4] sm:$0x1]
    %v242 = vlaneseq
    %v243 = vshrl.u32 %v242, 7
    %v244 = vsub.s32 0, %v243
    %v245 = vrot.slane %v240, %v244
    %v247 = vadd.f32 %v237, %v245
    %v248 = vld [vmem:[%s5] sm:$0x1]
    %v249 = vld [vmem:[#allocation7] sm:$0x1]
    %vm250 = vcmask 261120
    %v251 = vsel %vm250, %v247, 0.0
    %252 = vadd.xlane.f32.xlu0 %v251
    %v253 = vpop.xlane.xlu0 %252
    %v254 = vrcp.pop 32.0
    %v255 = vmul.f32 %v253, %v254
    %v256 = vsub.f32 %v247, %v255
    %v257 = vmul.f32 %v256, %v256
    %v258 = vsel %vm250, %v257, 0.0
    %259 = vadd.xlane.f32.xlu0 %v258
    %v260 = vpop.xlane.xlu0 %259
    %v261 = vmul.f32 %v260, %v254
    %v262 = vadd.f32 %v261, 1e-05
    %v263 = vrsqrt.pop %v262
    %v264 = vmul.f32 %v256, %v263
    %v266 = vlaneseq
    %v267 = vshrl.u32 %v266, 7
    %v268 = vsub.s32 0, %v267
    %v269 = vrot.slane %v248, %v268
    %v271 = vmul.f32 %v264, %v269
    %v273 = vlaneseq
    %v274 = vshrl.u32 %v273, 7
    %v275 = vsub.s32 0, %v274
    %v276 = vrot.slane %v249, %v275
    %v278 = vadd.f32 %v271, %v276
    %v279 = vmax.f32 %v278, 0.0
    %v280 = vld [vmem:[%s7] sm:$0xff]
    %v281 = vld [vmem:[%s7 + $0x8] sm:$0xff]
    %v282 = vld [vmem:[%s7 + $0x10] sm:$0xff]
    %v283 = vld [vmem:[%s7 + $0x18] sm:$0xff]
    %v284 = vld [vmem:[%s8] sm:$0x1]
    %v286 = vlaneseq
    %v287 = vshrl.u32 %v286, 7
    %v288 = vsub.s32 0, %v287
    %v289 = vrot.slane %v284, %v288
    %v292 = vsel %vm250, %v279, 0
    %294 = vmatprep.subr.mxu0 0.0
    %295 = vmatpush1.msra.mxu0 %v280
    %296 = vmatprep.subr.mxu0 0.0
    %297 = vmatpush1.msra.mxu0 %v281
    %298 = vmatprep.subr.mxu0 0.0
    %299 = vmatpush1.msra.mxu0 %v282
    %300 = vmatprep.subr.mxu0 0.0
    %301 = vmatpush1.msra.mxu0 %v283
    %302 = vmatprep.subr.mxu0 0.0
    %303 = vmatpush1.msra.mxu0 0.0
    %304 = vmatprep.subr.mxu0 0.0
    %305 = vmatpush1.msra.mxu0 0.0
    %306 = vmatprep.subr.mxu0 0.0
    %307 = vmatpush1.msra.mxu0 0.0
    %308 = vmatprep.subr.mxu0 0.0
    %309 = vmatpush1.msra.mxu0 0.0
    %310 = vmatprep.subr.mxu0 0.0
    %311 = vmatpush1.msra.mxu0 0.0
    %312 = vmatprep.subr.mxu0 0.0
    %313 = vmatpush1.msra.mxu0 0.0
    %314 = vmatprep.subr.mxu0 0.0
    %315 = vmatpush1.msra.mxu0 0.0
    %316 = vmatprep.subr.mxu0 0.0
    %317 = vmatpush1.msra.mxu0 0.0
    %318 = vmatprep.subr.mxu0 0.0
    %319 = vmatpush1.msra.mxu0 0.0
    %320 = vmatprep.subr.mxu0 0.0
    %321 = vmatpush1.msra.mxu0 0.0
    %322 = vmatprep.subr.mxu0 0.0
    %323 = vmatpush1.msra.mxu0 0.0
    %324 = vmatprep.subr.mxu0 0.0
    %325 = vmatpush1.msra.mxu0 0.0
    %326 = vmatprep.subr.mxu0 0.0
    %327 = vmatpush1.msra.mxu0 0.0
    %328 = vmatprep.subr.mxu0 0.0
    %329 = vmatpush1.msra.mxu0 0.0
    %330 = vmatprep.subr.mxu0 0.0
    %331 = vmatpush1.msra.mxu0 0.0
    %332 = vmatprep.subr.mxu0 0.0
    %333 = vmatpush1.msra.mxu0 0.0
    %334 = vmatprep.subr.mxu0 0.0
    %335 = vmatpush1.msra.mxu0 0.0
    %336 = vmatprep.subr.mxu0 0.0
    %337 = vmatpush1.msra.mxu0 0.0
    %338 = vmatprep.subr.mxu0 0.0
    %339 = vmatpush1.msra.mxu0 0.0
    %340 = vmatprep.subr.mxu0 0.0
    %341 = vmatpush1.msra.mxu0 0.0
    %342 = vmatprep.subr.mxu0 0.0
    %343 = vmatpush1.msra.mxu0 0.0
    %344 = vmatprep.subr.mxu0 0.0
    %345 = vmatpush1.msra.mxu0 0.0
    %346 = vmatprep.subr.mxu0 0.0
    %347 = vmatpush1.msra.mxu0 0.0
    %348 = vmatprep.subr.mxu0 0.0
    %349 = vmatpush1.msra.mxu0 0.0
    %350 = vmatprep.subr.mxu0 0.0
    %351 = vmatpush1.msra.mxu0 0.0
    %352 = vmatprep.subr.mxu0 0.0
    %353 = vmatpush1.msra.mxu0 0.0
    %354 = vmatprep.subr.mxu0 0.0
    %355 = vmatpush1.msra.mxu0 0.0
    %356 = vmatprep.subr.mxu0 0.0
    %357 = vmatpush1.msra.mxu0 0.0
    %358 = vmatprep.mubr.f32.mxu0 0.0
    %359 = vmatmul.mubr.f32.gmra.mrb[0].mxu0 %v292
    %v360 = vpop.f32.mrb[0].mxu0
    %v361 = vadd.f32 %v289, %v360
    %v362 = vpop.f32.mrb[0].mxu0
    %363 = vdwg.mxu0
    %v364 = vld [vmem:[%s9] sm:$0x1]
    %v365 = vld [vmem:[%s10] sm:$0x1]
    %v366 = vsel %vm250, %v361, 0.0
    %367 = vadd.xlane.f32.xlu0 %v366
    %v368 = vpop.xlane.xlu0 %367
    %v369 = vmul.f32 %v368, %v254
    %v370 = vsub.f32 %v361, %v369
    %v371 = vmul.f32 %v370, %v370
    %v372 = vsel %vm250, %v371, 0.0
    %373 = vadd.xlane.f32.xlu0 %v372
    %v374 = vpop.xlane.xlu0 %373
    %v375 = vmul.f32 %v374, %v254
    %v376 = vadd.f32 %v375, 1e-05
    %v377 = vrsqrt.pop %v376
    %v378 = vmul.f32 %v370, %v377
    %v380 = vlaneseq
    %v381 = vshrl.u32 %v380, 7
    %v382 = vsub.s32 0, %v381
    %v383 = vrot.slane %v364, %v382
    %v385 = vmul.f32 %v378, %v383
    %v387 = vlaneseq
    %v388 = vshrl.u32 %v387, 7
    %v389 = vsub.s32 0, %v388
    %v390 = vrot.slane %v365, %v389
    %v392 = vadd.f32 %v385, %v390
    %v393 = vmax.f32 %v392, 0.0
    %v394 = vld [vmem:[%s11] sm:$0x1]
    %v396 = vlaneseq
    %v397 = vshrl.u32 %v396, 7
    %v398 = vsub.s32 0, %v397
    %v399 = vrot.slane %v394, %v398
    %v401 = vmul.f32 %v393, %v399
    %v402 = vsel %vm250, %v401, 0.0
    %403 = vadd.xlane.f32.xlu0 %v402
    %v404 = vpop.xlane.xlu0 %403
    %v405 = vld [vmem:[#allocation2] sm:$0x1]
    %v407 = vlaneseq
    %v408 = vshrl.u32 %v407, 7
    %v409 = vsub.s32 0, %v408
    %v410 = vrot.slane %v405, %v409
    %v412 = vadd.f32 %v404, %v410
    %vm413 = vcmask 7168
    %414 = vst.msk [vmem:[%s13] sm:$0xff] %vm413, %v412
    // Predicated region
    $region66: #{tpu_custom_call.1} parent=1 // pred_check
      _
    $region67: #{tpu_custom_call.1} parent=1 // pred_check_branch
      %416 = sbr.rel (0) target = $region69
    $region68: #{tpu_custom_call.1} parent=1 // pred_region
      _
    $region69: #{tpu_custom_call.1} parent=1 // pred_fallthru
      _
    // Predicated region
    $region70: #{tpu_custom_call.1} parent=1 // pred_check
      _
    $region71: #{tpu_custom_call.1} parent=1 // pred_check_branch
      %418 = sbr.rel (0) target = $region73
    $region72: #{tpu_custom_call.1} parent=1 // pred_region
      _
    $region73: #{tpu_custom_call.1} parent=1 // pred_fallthru
      _
    %419 = vsyncpa [#allocation4], 1
    %420 = vsyncpa [#allocation6], 1

</llo_original>
